<compile_context>
chip_gen: v6e
topology: v6e:2x2x1
jax: 0.10.0
libtpu: 0.0.40
codegen_flags: <defaults>
</compile_context>

<pallas_src>
import functools

import jax
import jax.numpy as jnp
from jax import lax
from jax.experimental import pallas as pl
from jax.experimental.pallas import tpu as pltpu
import numpy as np


def _cdiv(a, b):
    return -(-a // b)


def _round_up(a, b):
    return _cdiv(a, b) * b


def _fcos_pred_kernel(t_ltrb_ref, conf_ref, cls_ref,
                      bbox_ref, idx_ref, score_ref,
                      *, stride, img_h, img_w, n_w):
    # t_ltrb_ref : (4,    R_TILE, 128)   rows = [l, t, r, b] logits
    # conf_ref   : (1,    R_TILE, 128)
    # cls_ref    : (nCls, R_TILE, 128)
    # bbox_ref   : (4,    R_TILE, 128)   rows = [cx, cy, w, h]
    # idx_ref    : (R_TILE, 128) int32
    # score_ref  : (R_TILE, 128) f32
    plane = idx_ref.shape                                   # (R_TILE, 128)
    r_tile = plane[0]

    # ---- grid-cell centers computed in-kernel (no coords DMA stream) -------
    r_io = lax.broadcasted_iota(jnp.int32, plane, 0).astype(jnp.float32)
    l_io = lax.broadcasted_iota(jnp.int32, plane, 1).astype(jnp.float32)
    base = (pl.program_id(1) * r_tile).astype(jnp.float32)
    s_f = (base + r_io) * 128.0 + l_io                      # flat spatial idx (exact in f32)
    nw_f = float(n_w)
    q = jnp.floor((s_f + 0.5) * (1.0 / nw_f))               # ~ s // nW
    rem = s_f - q * nw_f                                    # ~ s %  nW
    # exact +/-1 correction of the float division (cheap VPU ops)
    q = jnp.where(rem < 0.0, q - 1.0, q)
    rem = jnp.where(rem < 0.0, rem + nw_f, rem)
    q = jnp.where(rem >= nw_f, q + 1.0, q)
    rem = jnp.where(rem >= nw_f, rem - nw_f, rem)
    x_ = rem * stride + 0.5 * stride
    y_ = q * stride + 0.5 * stride

    # ---- ltrb_setting == 'exp_sl1'  ->  p_ltrb = exp(t_ltrb) * stride -------
    l_ = jnp.exp(t_ltrb_ref[0]) * stride
    t_ = jnp.exp(t_ltrb_ref[1]) * stride
    r_ = jnp.exp(t_ltrb_ref[2]) * stride
    b_ = jnp.exp(t_ltrb_ref[3]) * stride

    # _ltrb_to(..., 'x1y1x2y2') then clamp to image bounds
    x1 = jnp.clip(x_ - l_, 0.0, img_w)
    y1 = jnp.clip(y_ - t_, 0.0, img_h)
    x2 = jnp.clip(x_ + r_, 0.0, img_w)
    y2 = jnp.clip(y_ + b_, 0.0, img_h)

    # _xyxy_to_xywh — four dense full-plane stores
    bbox_ref[0] = (x1 + x2) * 0.5
    bbox_ref[1] = (y1 + y2) * 0.5
    bbox_ref[2] = x2 - x1
    bbox_ref[3] = y2 - y1

    # ---- class max / first-index argmax on raw logits (sigmoid monotonic) ---
    n_cls = cls_ref.shape[0]
    best = cls_ref[0]
    best_idx = jnp.zeros(plane, jnp.int32)
    for c in range(1, n_cls):
        row_c = cls_ref[c]
        gt = row_c > best                                   # strict '>' keeps first index
        best = jnp.where(gt, row_c, best)
        best_idx = jnp.where(gt, jnp.int32(c), best_idx)

    p_conf = jax.nn.sigmoid(conf_ref[0])                    # (R_TILE, 128)
    cls_score = jax.nn.sigmoid(best)                        # single sigmoid per cell

    idx_ref[...] = best_idx
    score_ref[...] = jnp.sqrt(p_conf * cls_score)


def _choose_tiling(S, nB, n_cls):
    """Rows-of-128 tiling: big tiles to amortize per-step overhead, >=2 steps
    (when possible) so v7x's two TensorCores both get work."""
    rows = _cdiv(S, 128)
    lane_target = 32768 if n_cls <= 16 else 16384
    cap_rows = max(8, lane_target // 128)
    n_tiles = _cdiv(rows, cap_rows)
    while nB * n_tiles < 2 and n_tiles * 8 < rows:
        n_tiles += 1
    if n_tiles <= 1:
        return 1, rows
    r_tile = _round_up(_cdiv(rows, n_tiles), 8)
    n_tiles = _cdiv(rows, r_tile)
    return n_tiles, r_tile


def fcos_layer_forward(raw, img_size, *, stride, n_cls, labels=None):
    """Pallas implementation of FCOSLayer.forward (inference path)."""
    assert labels is None  # TODO(synk): training branch not implemented
    t_ltrb = raw['bbox']
    conf_logits = raw['conf']
    cls_logits = raw['class']
    nB, nH, nW, _ = t_ltrb.shape
    img_h, img_w = img_size
    assert nH == int(img_h / stride) and nW == int(img_w / stride)
    assert conf_logits.shape == (nB, nH, nW, 1)
    assert cls_logits.shape == (nB, nH, nW, n_cls)

    S = nH * nW
    n_tiles, r_tile = _choose_tiling(S, nB, n_cls)
    R_total = n_tiles * r_tile
    S_pad = R_total * 128

    def to_planes(x, c):
        # (nB, nH, nW, c) -> (nB, c, R_total, 128): channel planes with the
        # flattened spatial dim laid out as dense (rows, 128) lane tiles.
        # TODO(synk): fuse this relayout into the producing detection head.
        x = jnp.swapaxes(x.reshape(nB, S, c), 1, 2).astype(jnp.float32)
        if S_pad != S:
            x = jnp.pad(x, ((0, 0), (0, 0), (0, S_pad - S)))
        return x.reshape(nB, c, R_total, 128)

    bbox_in = to_planes(t_ltrb, 4)
    conf_in = to_planes(conf_logits, 1)
    cls_in = to_planes(cls_logits, n_cls)

    kernel = functools.partial(
        _fcos_pred_kernel,
        stride=float(stride), img_h=float(img_h), img_w=float(img_w), n_w=nW)

    # VMEM budget from the actual double-buffered I/O footprint (cap for v7x).
    plane_bytes = r_tile * 128 * 4
    io_bytes = 2 * (4 + 1 + n_cls + 4 + 1 + 1) * plane_bytes
    vmem_limit = int(min(48 * 1024 * 1024, max(16 * 1024 * 1024, 2 * io_bytes)))

    bbox, cls_idx, score = pl.pallas_call(
        kernel,
        out_shape=(
            jax.ShapeDtypeStruct((nB, 4, R_total, 128), jnp.float32),
            jax.ShapeDtypeStruct((nB, R_total, 128), jnp.int32),
            jax.ShapeDtypeStruct((nB, R_total, 128), jnp.float32),
        ),
        grid_spec=pltpu.PrefetchScalarGridSpec(
            num_scalar_prefetch=0,
            grid=(nB, n_tiles),
            in_specs=[
                pl.BlockSpec((None, 4, r_tile, 128), lambda b, j: (b, 0, j, 0)),
                pl.BlockSpec((None, 1, r_tile, 128), lambda b, j: (b, 0, j, 0)),
                pl.BlockSpec((None, n_cls, r_tile, 128), lambda b, j: (b, 0, j, 0)),
            ],
            out_specs=[
                pl.BlockSpec((None, 4, r_tile, 128), lambda b, j: (b, 0, j, 0)),
                pl.BlockSpec((None, r_tile, 128), lambda b, j: (b, j, 0)),
                pl.BlockSpec((None, r_tile, 128), lambda b, j: (b, j, 0)),
            ],
        ),
        compiler_params=pltpu.CompilerParams(
            dimension_semantics=("parallel", "parallel"),
            vmem_limit_bytes=vmem_limit),
    )(bbox_in, conf_in, cls_in)

    # Padded lanes [S, S_pad) are garbage and must stay cropped here.
    preds = {
        'bbox': jnp.swapaxes(bbox.reshape(nB, 4, S_pad)[:, :, :S], 1, 2),  # (nB, S, 4)
        'class_idx': cls_idx.reshape(nB, S_pad)[:, :S],                    # (nB, S)
        'score': score.reshape(nB, S_pad)[:, :S],                          # (nB, S)
    }
    return preds, None


def _reference_forward(raw, img_size, *, stride, n_cls):
    """Pure-JAX reference reproducing the PyTorch forward (labels=None)."""
    t_ltrb = raw['bbox']
    conf_logits = raw['conf']
    cls_logits = raw['class']
    nB, nH, nW, _ = t_ltrb.shape
    img_h, img_w = img_size

    p_ltrb = jnp.exp(t_ltrb) * stride
    y_ = (jnp.arange(nH, dtype=jnp.float32) * stride + stride / 2).reshape(1, nH, 1, 1)
    x_ = (jnp.arange(nW, dtype=jnp.float32) * stride + stride / 2).reshape(1, 1, nW, 1)
    x1 = jnp.clip(x_[..., 0] - p_ltrb[..., 0], 0, img_w)
    y1 = jnp.clip(y_[..., 0] - p_ltrb[..., 1], 0, img_h)
    x2 = jnp.clip(x_[..., 0] + p_ltrb[..., 2], 0, img_w)
    y2 = jnp.clip(y_[..., 0] + p_ltrb[..., 3], 0, img_h)
    p_xywh = jnp.stack([(x1 + x2) / 2, (y1 + y2) / 2, x2 - x1, y2 - y1], axis=-1)
    p_conf = jax.nn.sigmoid(conf_logits)
    p_cls = jax.nn.sigmoid(cls_logits)
    cls_score = jnp.max(p_cls, axis=-1, keepdims=True)
    cls_idx = jnp.argmax(p_cls, axis=-1)
    confs = jnp.sqrt(p_conf * cls_score)
    return {
        'bbox': p_xywh.reshape(nB, nH * nW, 4),
        'class_idx': cls_idx.reshape(nB, nH * nW),
        'score': confs.reshape(nB, nH * nW),
    }


if __name__ == "__main__":
    # cfg-equivalent constants (deterministic, in-script)
    stride = 8
    n_cls = 8
    img_size = (128, 128)          # (img_h, img_w)
    nB = 2
    nH, nW = img_size[0] // stride, img_size[1] // stride

    key = jax.random.PRNGKey(0)
    k1, k2, k3 = jax.random.split(key, 3)
    raw = {
        'bbox': 0.5 * jax.random.normal(k1, (nB, nH, nW, 4), dtype=jnp.float32),
        'conf': jax.random.normal(k2, (nB, nH, nW, 1), dtype=jnp.float32),
        'class': jax.random.normal(k3, (nB, nH, nW, n_cls), dtype=jnp.float32),
    }

    preds, loss = fcos_layer_forward(raw, img_size, stride=stride, n_cls=n_cls)
    jax.block_until_ready(preds)

    ref = _reference_forward(raw, img_size, stride=stride, n_cls=n_cls)
    assert np.allclose(np.asarray(preds['bbox']), np.asarray(ref['bbox']), atol=1e-4, rtol=1e-4)
    assert np.allclose(np.asarray(preds['score']), np.asarray(ref['score']), atol=1e-5, rtol=1e-5)
    assert np.array_equal(np.asarray(preds['class_idx']),
                          np.asarray(ref['class_idx']).astype(np.int32))
    assert loss is None

    print("KERNEL_OK")
</pallas_src>

<mosaic_0001>
module attributes {stable_mosaic.version = 11 : i64} {
  func.func @_fcos_pred_kernel(%arg0: i32, %arg1: i32, %arg2: memref<1x4x2x128xf32, #tpu.memory_space<vmem>>, %arg3: memref<1x1x2x128xf32, #tpu.memory_space<vmem>>, %arg4: memref<1x8x2x128xf32, #tpu.memory_space<vmem>>, %arg5: memref<1x4x2x128xf32, #tpu.memory_space<vmem>>, %arg6: memref<1x2x128xi32, #tpu.memory_space<vmem>>, %arg7: memref<1x2x128xf32, #tpu.memory_space<vmem>>) attributes {dimension_semantics = [#tpu.dimension_semantics<parallel>, #tpu.dimension_semantics<parallel>], iteration_bounds = array<i64: 2, 1>, scalar_prefetch = 0 : i64, scratch_operands = 0 : i64, tpu.core_type = #tpu.core_type<tc>, window_params = [{transform_indices = @transform_0, window_bounds = array<i64: 1, 4, 2, 128>}, {transform_indices = @transform_1, window_bounds = array<i64: 1, 1, 2, 128>}, {transform_indices = @transform_2, window_bounds = array<i64: 1, 8, 2, 128>}, {transform_indices = @transform_3, window_bounds = array<i64: 1, 4, 2, 128>}, {transform_indices = @transform_4, window_bounds = array<i64: 1, 2, 128>}, {transform_indices = @transform_5, window_bounds = array<i64: 1, 2, 128>}]} {
    %0 = tpu.iota {dimensions = array<i32: 0>} : vector<2x128xi32>
    %1 = arith.sitofp %0 : vector<2x128xi32> to vector<2x128xf32>
    %2 = tpu.iota {dimensions = array<i32: 1>} : vector<2x128xi32>
    %3 = arith.sitofp %2 : vector<2x128xi32> to vector<2x128xf32>
    %c2_i32 = arith.constant 2 : i32
    %4 = arith.muli %arg1, %c2_i32 : i32
    %5 = arith.sitofp %4 : i32 to f32
    %6 = vector.broadcast %5 : f32 to vector<2x128xf32>
    %7 = arith.addf %6, %1 : vector<2x128xf32>
    %cst = arith.constant 1.280000e+02 : f32
    %8 = vector.broadcast %cst : f32 to vector<2x128xf32>
    %9 = arith.mulf %7, %8 : vector<2x128xf32>
    %10 = arith.addf %9, %3 : vector<2x128xf32>
    %cst_0 = arith.constant 5.000000e-01 : f32
    %11 = vector.broadcast %cst_0 : f32 to vector<2x128xf32>
    %12 = arith.addf %10, %11 : vector<2x128xf32>
    %cst_1 = arith.constant 6.250000e-02 : f32
    %13 = vector.broadcast %cst_1 : f32 to vector<2x128xf32>
    %14 = arith.mulf %12, %13 : vector<2x128xf32>
    %15 = math.floor %14 : vector<2x128xf32>
    %cst_2 = arith.constant 1.600000e+01 : f32
    %16 = vector.broadcast %cst_2 : f32 to vector<2x128xf32>
    %17 = arith.mulf %15, %16 : vector<2x128xf32>
    %18 = arith.subf %10, %17 : vector<2x128xf32>
    %cst_3 = arith.constant 0.000000e+00 : f32
    %19 = vector.broadcast %cst_3 : f32 to vector<2x128xf32>
    %20 = arith.cmpf olt, %18, %19 : vector<2x128xf32>
    %cst_4 = arith.constant 1.000000e+00 : f32
    %21 = vector.broadcast %cst_4 : f32 to vector<2x128xf32>
    %22 = arith.subf %15, %21 : vector<2x128xf32>
    %23 = arith.select %20, %22, %15 : vector<2x128xi1>, vector<2x128xf32>
    %cst_5 = arith.constant 0.000000e+00 : f32
    %24 = vector.broadcast %cst_5 : f32 to vector<2x128xf32>
    %25 = arith.cmpf olt, %18, %24 : vector<2x128xf32>
    %cst_6 = arith.constant 1.600000e+01 : f32
    %26 = vector.broadcast %cst_6 : f32 to vector<2x128xf32>
    %27 = arith.addf %18, %26 : vector<2x128xf32>
    %28 = arith.select %25, %27, %18 : vector<2x128xi1>, vector<2x128xf32>
    %cst_7 = arith.constant 1.600000e+01 : f32
    %29 = vector.broadcast %cst_7 : f32 to vector<2x128xf32>
    %30 = arith.cmpf oge, %28, %29 : vector<2x128xf32>
    %cst_8 = arith.constant 1.000000e+00 : f32
    %31 = vector.broadcast %cst_8 : f32 to vector<2x128xf32>
    %32 = arith.addf %23, %31 : vector<2x128xf32>
    %33 = arith.select %30, %32, %23 : vector<2x128xi1>, vector<2x128xf32>
    %cst_9 = arith.constant 1.600000e+01 : f32
    %34 = vector.broadcast %cst_9 : f32 to vector<2x128xf32>
    %35 = arith.cmpf oge, %28, %34 : vector<2x128xf32>
    %cst_10 = arith.constant 1.600000e+01 : f32
    %36 = vector.broadcast %cst_10 : f32 to vector<2x128xf32>
    %37 = arith.subf %28, %36 : vector<2x128xf32>
    %38 = arith.select %35, %37, %28 : vector<2x128xi1>, vector<2x128xf32>
    %cst_11 = arith.constant 8.000000e+00 : f32
    %39 = vector.broadcast %cst_11 : f32 to vector<2x128xf32>
    %40 = arith.mulf %38, %39 : vector<2x128xf32>
    %cst_12 = arith.constant 4.000000e+00 : f32
    %41 = vector.broadcast %cst_12 : f32 to vector<2x128xf32>
    %42 = arith.addf %40, %41 : vector<2x128xf32>
    %cst_13 = arith.constant 8.000000e+00 : f32
    %43 = vector.broadcast %cst_13 : f32 to vector<2x128xf32>
    %44 = arith.mulf %33, %43 : vector<2x128xf32>
    %cst_14 = arith.constant 4.000000e+00 : f32
    %45 = vector.broadcast %cst_14 : f32 to vector<2x128xf32>
    %46 = arith.addf %44, %45 : vector<2x128xf32>
    %c0 = arith.constant 0 : index
    %c0_15 = arith.constant 0 : index
    %c0_16 = arith.constant 0 : index
    %c0_17 = arith.constant 0 : index
    %47 = vector.load %arg2[%c0, %c0_15, %c0_16, %c0_17] : memref<1x4x2x128xf32, #tpu.memory_space<vmem>>, vector<1x1x2x128xf32>
    %48 = vector.shape_cast %47 : vector<1x1x2x128xf32> to vector<2x128xf32>
    %49 = math.exp %48 : vector<2x128xf32>
    %cst_18 = arith.constant 8.000000e+00 : f32
    %50 = vector.broadcast %cst_18 : f32 to vector<2x128xf32>
    %51 = arith.mulf %49, %50 : vector<2x128xf32>
    %c0_19 = arith.constant 0 : index
    %c1 = arith.constant 1 : index
    %c0_20 = arith.constant 0 : index
    %c0_21 = arith.constant 0 : index
    %52 = vector.load %arg2[%c0_19, %c1, %c0_20, %c0_21] : memref<1x4x2x128xf32, #tpu.memory_space<vmem>>, vector<1x1x2x128xf32>
    %53 = vector.shape_cast %52 : vector<1x1x2x128xf32> to vector<2x128xf32>
    %54 = math.exp %53 : vector<2x128xf32>
    %cst_22 = arith.constant 8.000000e+00 : f32
    %55 = vector.broadcast %cst_22 : f32 to vector<2x128xf32>
    %56 = arith.mulf %54, %55 : vector<2x128xf32>
    %c0_23 = arith.constant 0 : index
    %c2 = arith.constant 2 : index
    %c0_24 = arith.constant 0 : index
    %c0_25 = arith.constant 0 : index
    %57 = vector.load %arg2[%c0_23, %c2, %c0_24, %c0_25] : memref<1x4x2x128xf32, #tpu.memory_space<vmem>>, vector<1x1x2x128xf32>
    %58 = vector.shape_cast %57 : vector<1x1x2x128xf32> to vector<2x128xf32>
    %59 = math.exp %58 : vector<2x128xf32>
    %cst_26 = arith.constant 8.000000e+00 : f32
    %60 = vector.broadcast %cst_26 : f32 to vector<2x128xf32>
    %61 = arith.mulf %59, %60 : vector<2x128xf32>
    %c0_27 = arith.constant 0 : index
    %c3 = arith.constant 3 : index
    %c0_28 = arith.constant 0 : index
    %c0_29 = arith.constant 0 : index
    %62 = vector.load %arg2[%c0_27, %c3, %c0_28, %c0_29] : memref<1x4x2x128xf32, #tpu.memory_space<vmem>>, vector<1x1x2x128xf32>
    %63 = vector.shape_cast %62 : vector<1x1x2x128xf32> to vector<2x128xf32>
    %64 = math.exp %63 : vector<2x128xf32>
    %cst_30 = arith.constant 8.000000e+00 : f32
    %65 = vector.broadcast %cst_30 : f32 to vector<2x128xf32>
    %66 = arith.mulf %64, %65 : vector<2x128xf32>
    %67 = arith.subf %42, %51 : vector<2x128xf32>
    %cst_31 = arith.constant 0.000000e+00 : f32
    %cst_32 = arith.constant 1.280000e+02 : f32
    %68 = vector.broadcast %cst_31 : f32 to vector<2x128xf32>
    %69 = arith.maximumf %68, %67 : vector<2x128xf32>
    %70 = vector.broadcast %cst_32 : f32 to vector<2x128xf32>
    %71 = arith.minimumf %70, %69 : vector<2x128xf32>
    %72 = arith.subf %46, %56 : vector<2x128xf32>
    %cst_33 = arith.constant 0.000000e+00 : f32
    %cst_34 = arith.constant 1.280000e+02 : f32
    %73 = vector.broadcast %cst_33 : f32 to vector<2x128xf32>
    %74 = arith.maximumf %73, %72 : vector<2x128xf32>
    %75 = vector.broadcast %cst_34 : f32 to vector<2x128xf32>
    %76 = arith.minimumf %75, %74 : vector<2x128xf32>
    %77 = arith.addf %42, %61 : vector<2x128xf32>
    %cst_35 = arith.constant 0.000000e+00 : f32
    %cst_36 = arith.constant 1.280000e+02 : f32
    %78 = vector.broadcast %cst_35 : f32 to vector<2x128xf32>
    %79 = arith.maximumf %78, %77 : vector<2x128xf32>
    %80 = vector.broadcast %cst_36 : f32 to vector<2x128xf32>
    %81 = arith.minimumf %80, %79 : vector<2x128xf32>
    %82 = arith.addf %46, %66 : vector<2x128xf32>
    %cst_37 = arith.constant 0.000000e+00 : f32
    %cst_38 = arith.constant 1.280000e+02 : f32
    %83 = vector.broadcast %cst_37 : f32 to vector<2x128xf32>
    %84 = arith.maximumf %83, %82 : vector<2x128xf32>
    %85 = vector.broadcast %cst_38 : f32 to vector<2x128xf32>
    %86 = arith.minimumf %85, %84 : vector<2x128xf32>
    %87 = arith.addf %71, %81 : vector<2x128xf32>
    %cst_39 = arith.constant 5.000000e-01 : f32
    %88 = vector.broadcast %cst_39 : f32 to vector<2x128xf32>
    %89 = arith.mulf %87, %88 : vector<2x128xf32>
    %c0_40 = arith.constant 0 : index
    %c0_41 = arith.constant 0 : index
    %c0_42 = arith.constant 0 : index
    %c0_43 = arith.constant 0 : index
    %90 = vector.load %arg5[%c0_40, %c0_41, %c0_42, %c0_43] : memref<1x4x2x128xf32, #tpu.memory_space<vmem>>, vector<1x1x2x128xf32>
    %91 = vector.shape_cast %90 : vector<1x1x2x128xf32> to vector<2x128xf32>
    %92 = vector.shape_cast %89 : vector<2x128xf32> to vector<1x1x2x128xf32>
    tpu.vector_store %arg5[%c0_40, %c0_41, %c0_42, %c0_43], %92 {strides = array<i32>} : memref<1x4x2x128xf32, #tpu.memory_space<vmem>>, vector<1x1x2x128xf32>,
    %93 = arith.addf %76, %86 : vector<2x128xf32>
    %cst_44 = arith.constant 5.000000e-01 : f32
    %94 = vector.broadcast %cst_44 : f32 to vector<2x128xf32>
    %95 = arith.mulf %93, %94 : vector<2x128xf32>
    %c0_45 = arith.constant 0 : index
    %c1_46 = arith.constant 1 : index
    %c0_47 = arith.constant 0 : index
    %c0_48 = arith.constant 0 : index
    %96 = vector.load %arg5[%c0_45, %c1_46, %c0_47, %c0_48] : memref<1x4x2x128xf32, #tpu.memory_space<vmem>>, vector<1x1x2x128xf32>
    %97 = vector.shape_cast %96 : vector<1x1x2x128xf32> to vector<2x128xf32>
    %98 = vector.shape_cast %95 : vector<2x128xf32> to vector<1x1x2x128xf32>
    tpu.vector_store %arg5[%c0_45, %c1_46, %c0_47, %c0_48], %98 {strides = array<i32>} : memref<1x4x2x128xf32, #tpu.memory_space<vmem>>, vector<1x1x2x128xf32>,
    %99 = arith.subf %81, %71 : vector<2x128xf32>
    %c0_49 = arith.constant 0 : index
    %c2_50 = arith.constant 2 : index
    %c0_51 = arith.constant 0 : index
    %c0_52 = arith.constant 0 : index
    %100 = vector.load %arg5[%c0_49, %c2_50, %c0_51, %c0_52] : memref<1x4x2x128xf32, #tpu.memory_space<vmem>>, vector<1x1x2x128xf32>
    %101 = vector.shape_cast %100 : vector<1x1x2x128xf32> to vector<2x128xf32>
    %102 = vector.shape_cast %99 : vector<2x128xf32> to vector<1x1x2x128xf32>
    tpu.vector_store %arg5[%c0_49, %c2_50, %c0_51, %c0_52], %102 {strides = array<i32>} : memref<1x4x2x128xf32, #tpu.memory_space<vmem>>, vector<1x1x2x128xf32>,
    %103 = arith.subf %86, %76 : vector<2x128xf32>
    %c0_53 = arith.constant 0 : index
    %c3_54 = arith.constant 3 : index
    %c0_55 = arith.constant 0 : index
    %c0_56 = arith.constant 0 : index
    %104 = vector.load %arg5[%c0_53, %c3_54, %c0_55, %c0_56] : memref<1x4x2x128xf32, #tpu.memory_space<vmem>>, vector<1x1x2x128xf32>
    %105 = vector.shape_cast %104 : vector<1x1x2x128xf32> to vector<2x128xf32>
    %106 = vector.shape_cast %103 : vector<2x128xf32> to vector<1x1x2x128xf32>
    tpu.vector_store %arg5[%c0_53, %c3_54, %c0_55, %c0_56], %106 {strides = array<i32>} : memref<1x4x2x128xf32, #tpu.memory_space<vmem>>, vector<1x1x2x128xf32>,
    %c0_57 = arith.constant 0 : index
    %c0_58 = arith.constant 0 : index
    %c0_59 = arith.constant 0 : index
    %c0_60 = arith.constant 0 : index
    %107 = vector.load %arg4[%c0_57, %c0_58, %c0_59, %c0_60] : memref<1x8x2x128xf32, #tpu.memory_space<vmem>>, vector<1x1x2x128xf32>
    %108 = vector.shape_cast %107 : vector<1x1x2x128xf32> to vector<2x128xf32>
    %c0_i32 = arith.constant 0 : i32
    %109 = vector.broadcast %c0_i32 : i32 to vector<2x128xi32>
    %c0_61 = arith.constant 0 : index
    %c1_62 = arith.constant 1 : index
    %c0_63 = arith.constant 0 : index
    %c0_64 = arith.constant 0 : index
    %110 = vector.load %arg4[%c0_61, %c1_62, %c0_63, %c0_64] : memref<1x8x2x128xf32, #tpu.memory_space<vmem>>, vector<1x1x2x128xf32>
    %111 = vector.shape_cast %110 : vector<1x1x2x128xf32> to vector<2x128xf32>
    %112 = arith.cmpf ogt, %111, %108 : vector<2x128xf32>
    %113 = arith.select %112, %111, %108 : vector<2x128xi1>, vector<2x128xf32>
    %c1_i32 = arith.constant 1 : i32
    %114 = vector.broadcast %c1_i32 : i32 to vector<2x128xi32>
    %115 = arith.select %112, %114, %109 : vector<2x128xi1>, vector<2x128xi32>
    %c0_65 = arith.constant 0 : index
    %c2_66 = arith.constant 2 : index
    %c0_67 = arith.constant 0 : index
    %c0_68 = arith.constant 0 : index
    %116 = vector.load %arg4[%c0_65, %c2_66, %c0_67, %c0_68] : memref<1x8x2x128xf32, #tpu.memory_space<vmem>>, vector<1x1x2x128xf32>
    %117 = vector.shape_cast %116 : vector<1x1x2x128xf32> to vector<2x128xf32>
    %118 = arith.cmpf ogt, %117, %113 : vector<2x128xf32>
    %119 = arith.select %118, %117, %113 : vector<2x128xi1>, vector<2x128xf32>
    %c2_i32_69 = arith.constant 2 : i32
    %120 = vector.broadcast %c2_i32_69 : i32 to vector<2x128xi32>
    %121 = arith.select %118, %120, %115 : vector<2x128xi1>, vector<2x128xi32>
    %c0_70 = arith.constant 0 : index
    %c3_71 = arith.constant 3 : index
    %c0_72 = arith.constant 0 : index
    %c0_73 = arith.constant 0 : index
    %122 = vector.load %arg4[%c0_70, %c3_71, %c0_72, %c0_73] : memref<1x8x2x128xf32, #tpu.memory_space<vmem>>, vector<1x1x2x128xf32>
    %123 = vector.shape_cast %122 : vector<1x1x2x128xf32> to vector<2x128xf32>
    %124 = arith.cmpf ogt, %123, %119 : vector<2x128xf32>
    %125 = arith.select %124, %123, %119 : vector<2x128xi1>, vector<2x128xf32>
    %c3_i32 = arith.constant 3 : i32
    %126 = vector.broadcast %c3_i32 : i32 to vector<2x128xi32>
    %127 = arith.select %124, %126, %121 : vector<2x128xi1>, vector<2x128xi32>
    %c0_74 = arith.constant 0 : index
    %c4 = arith.constant 4 : index
    %c0_75 = arith.constant 0 : index
    %c0_76 = arith.constant 0 : index
    %128 = vector.load %arg4[%c0_74, %c4, %c0_75, %c0_76] : memref<1x8x2x128xf32, #tpu.memory_space<vmem>>, vector<1x1x2x128xf32>
    %129 = vector.shape_cast %128 : vector<1x1x2x128xf32> to vector<2x128xf32>
    %130 = arith.cmpf ogt, %129, %125 : vector<2x128xf32>
    %131 = arith.select %130, %129, %125 : vector<2x128xi1>, vector<2x128xf32>
    %c4_i32 = arith.constant 4 : i32
    %132 = vector.broadcast %c4_i32 : i32 to vector<2x128xi32>
    %133 = arith.select %130, %132, %127 : vector<2x128xi1>, vector<2x128xi32>
    %c0_77 = arith.constant 0 : index
    %c5 = arith.constant 5 : index
    %c0_78 = arith.constant 0 : index
    %c0_79 = arith.constant 0 : index
    %134 = vector.load %arg4[%c0_77, %c5, %c0_78, %c0_79] : memref<1x8x2x128xf32, #tpu.memory_space<vmem>>, vector<1x1x2x128xf32>
    %135 = vector.shape_cast %134 : vector<1x1x2x128xf32> to vector<2x128xf32>
    %136 = arith.cmpf ogt, %135, %131 : vector<2x128xf32>
    %137 = arith.select %136, %135, %131 : vector<2x128xi1>, vector<2x128xf32>
    %c5_i32 = arith.constant 5 : i32
    %138 = vector.broadcast %c5_i32 : i32 to vector<2x128xi32>
    %139 = arith.select %136, %138, %133 : vector<2x128xi1>, vector<2x128xi32>
    %c0_80 = arith.constant 0 : index
    %c6 = arith.constant 6 : index
    %c0_81 = arith.constant 0 : index
    %c0_82 = arith.constant 0 : index
    %140 = vector.load %arg4[%c0_80, %c6, %c0_81, %c0_82] : memref<1x8x2x128xf32, #tpu.memory_space<vmem>>, vector<1x1x2x128xf32>
    %141 = vector.shape_cast %140 : vector<1x1x2x128xf32> to vector<2x128xf32>
    %142 = arith.cmpf ogt, %141, %137 : vector<2x128xf32>
    %143 = arith.select %142, %141, %137 : vector<2x128xi1>, vector<2x128xf32>
    %c6_i32 = arith.constant 6 : i32
    %144 = vector.broadcast %c6_i32 : i32 to vector<2x128xi32>
    %145 = arith.select %142, %144, %139 : vector<2x128xi1>, vector<2x128xi32>
    %c0_83 = arith.constant 0 : index
    %c7 = arith.constant 7 : index
    %c0_84 = arith.constant 0 : index
    %c0_85 = arith.constant 0 : index
    %146 = vector.load %arg4[%c0_83, %c7, %c0_84, %c0_85] : memref<1x8x2x128xf32, #tpu.memory_space<vmem>>, vector<1x1x2x128xf32>
    %147 = vector.shape_cast %146 : vector<1x1x2x128xf32> to vector<2x128xf32>
    %148 = arith.cmpf ogt, %147, %143 : vector<2x128xf32>
    %149 = arith.select %148, %147, %143 : vector<2x128xi1>, vector<2x128xf32>
    %c7_i32 = arith.constant 7 : i32
    %150 = vector.broadcast %c7_i32 : i32 to vector<2x128xi32>
    %151 = arith.select %148, %150, %145 : vector<2x128xi1>, vector<2x128xi32>
    %c0_86 = arith.constant 0 : index
    %c0_87 = arith.constant 0 : index
    %c0_88 = arith.constant 0 : index
    %c0_89 = arith.constant 0 : index
    %152 = vector.load %arg3[%c0_86, %c0_87, %c0_88, %c0_89] : memref<1x1x2x128xf32, #tpu.memory_space<vmem>>, vector<1x1x2x128xf32>
    %153 = vector.shape_cast %152 : vector<1x1x2x128xf32> to vector<2x128xf32>
    %154 = arith.negf %153 : vector<2x128xf32>
    %155 = math.exp %154 : vector<2x128xf32>
    %cst_90 = arith.constant 1.000000e+00 : f32
    %156 = vector.broadcast %cst_90 : f32 to vector<2x128xf32>
    %157 = arith.addf %156, %155 : vector<2x128xf32>
    %158 = arith.divf %156, %157 : vector<2x128xf32>
    %159 = arith.negf %149 : vector<2x128xf32>
    %160 = math.exp %159 : vector<2x128xf32>
    %cst_91 = arith.constant 1.000000e+00 : f32
    %161 = vector.broadcast %cst_91 : f32 to vector<2x128xf32>
    %162 = arith.addf %161, %160 : vector<2x128xf32>
    %163 = arith.divf %161, %162 : vector<2x128xf32>
    %c0_92 = arith.constant 0 : index
    %c0_93 = arith.constant 0 : index
    %c0_94 = arith.constant 0 : index
    %164 = vector.load %arg6[%c0_92, %c0_93, %c0_94] : memref<1x2x128xi32, #tpu.memory_space<vmem>>, vector<1x2x128xi32>
    %165 = vector.shape_cast %164 : vector<1x2x128xi32> to vector<2x128xi32>
    %166 = vector.shape_cast %151 : vector<2x128xi32> to vector<1x2x128xi32>
    tpu.vector_store %arg6[%c0_92, %c0_93, %c0_94], %166 {strides = array<i32>} : memref<1x2x128xi32, #tpu.memory_space<vmem>>, vector<1x2x128xi32>,
    %167 = arith.mulf %158, %163 : vector<2x128xf32>
    %168 = math.sqrt %167 : vector<2x128xf32>
    %c0_95 = arith.constant 0 : index
    %c0_96 = arith.constant 0 : index
    %c0_97 = arith.constant 0 : index
    %169 = vector.load %arg7[%c0_95, %c0_96, %c0_97] : memref<1x2x128xf32, #tpu.memory_space<vmem>>, vector<1x2x128xf32>
    %170 = vector.shape_cast %169 : vector<1x2x128xf32> to vector<2x128xf32>
    %171 = vector.shape_cast %168 : vector<2x128xf32> to vector<1x2x128xf32>
    tpu.vector_store %arg7[%c0_95, %c0_96, %c0_97], %171 {strides = array<i32>} : memref<1x2x128xf32, #tpu.memory_space<vmem>>, vector<1x2x128xf32>,
    return
  }
  func.func @transform_0(%arg0: i32, %arg1: i32) -> (i32, i32, i32, i32) {
    %c0_i32 = arith.constant 0 : i32
    %c0_i32_0 = arith.constant 0 : i32
    %c0_i32_1 = arith.constant 0 : i32
    return %arg0, %c0_i32, %arg1, %c0_i32_0 : i32, i32, i32, i32
  }
  func.func @transform_1(%arg0: i32, %arg1: i32) -> (i32, i32, i32, i32) {
    %c0_i32 = arith.constant 0 : i32
    %c0_i32_0 = arith.constant 0 : i32
    %c0_i32_1 = arith.constant 0 : i32
    return %arg0, %c0_i32, %arg1, %c0_i32_0 : i32, i32, i32, i32
  }
  func.func @transform_2(%arg0: i32, %arg1: i32) -> (i32, i32, i32, i32) {
    %c0_i32 = arith.constant 0 : i32
    %c0_i32_0 = arith.constant 0 : i32
    %c0_i32_1 = arith.constant 0 : i32
    return %arg0, %c0_i32, %arg1, %c0_i32_0 : i32, i32, i32, i32
  }
  func.func @transform_3(%arg0: i32, %arg1: i32) -> (i32, i32, i32, i32) {
    %c0_i32 = arith.constant 0 : i32
    %c0_i32_0 = arith.constant 0 : i32
    %c0_i32_1 = arith.constant 0 : i32
    return %arg0, %c0_i32, %arg1, %c0_i32_0 : i32, i32, i32, i32
  }
  func.func @transform_4(%arg0: i32, %arg1: i32) -> (i32, i32, i32) {
    %c0_i32 = arith.constant 0 : i32
    %c0_i32_0 = arith.constant 0 : i32
    return %arg0, %arg1, %c0_i32 : i32, i32, i32
  }
  func.func @transform_5(%arg0: i32, %arg1: i32) -> (i32, i32, i32) {
    %c0_i32 = arith.constant 0 : i32
    %c0_i32_0 = arith.constant 0 : i32
    return %arg0, %arg1, %c0_i32 : i32, i32, i32
  }
}

</mosaic_0001>

<llo_original>
// kernel: tpu_custom_call.1
$region0: #{tpu_custom_call.1}
  #allocation0 [shape = 'u32[]', space=smem, size = 0x4, offset = 0x4, fixed_abs, tag = 'smem constant byte address 0x4 - core index']
  #allocation1 [shape = 'u32[144,128]{1,0:T(1,128)}', space=vmem, size = 0x12000, scoped, tag = 'internal scratch']
  %s0 = inlined_call_operand.hbm [shape: f32[2,4,2,128], index: 0, kind: input, shape index: {}]
  %s1 = inlined_call_operand.hbm [shape: f32[2,1,2,128], index: 1, kind: input, shape index: {}]
  %s2 = inlined_call_operand.hbm [shape: f32[2,8,2,128], index: 2, kind: input, shape index: {}]
  %s3 = inlined_call_operand.hbm [shape: f32[2,4,2,128], index: 3, kind: output, shape index: {0}]
  %s4 = inlined_call_operand.hbm [shape: s32[2,2,128], index: 4, kind: output, shape index: {1}]
  %s5 = inlined_call_operand.hbm [shape: f32[2,2,128], index: 5, kind: output, shape index: {2}]
  %6 = xla_tuple %s3, %s4, %s5
  %s7 = sld [smem:[#allocation0]]
  $region73: #{tpu_custom_call.1} parent=0
    _
  %s9 = ssub.s32 1, %s7
  %s10 = scalar_select 0, %s9, %s7
  $region1: #{tpu_custom_call.1} parent=0
    #allocation2 [shape = 'u8[8192]{0}', space=vmem, size = 0x2000, scoped, tag = 'input window, operand 0']
    #allocation3 [shape = 's32[2]{0}', space=sflag, size = 0x8, scoped, tag = 'scoped memory for tpu_custom_call.1']
    #allocation4 [shape = 's32[2]{0}', space=sflag, size = 0x8, scoped, tag = 'scoped memory for tpu_custom_call.1']
    #allocation5 [shape = 'u8[2048]{0}', space=vmem, size = 0x800, scoped, tag = 'input window, operand 1']
    #allocation6 [shape = 's32[2]{0}', space=sflag, size = 0x8, scoped, tag = 'scoped memory for tpu_custom_call.1']
    #allocation7 [shape = 'u8[16384]{0}', space=vmem, size = 0x4000, scoped, tag = 'input window, operand 2']
    #allocation8 [shape = 'u8[8192]{0}', space=vmem, size = 0x2000, scoped, tag = 'output window, operand 0']
    #allocation9 [shape = 'u8[2048]{0}', space=vmem, size = 0x800, scoped, tag = 'output window, operand 1']
    #allocation10 [shape = 's32[2]{0}', space=sflag, size = 0x8, scoped, tag = 'scoped memory for tpu_custom_call.1']
    #allocation11 [shape = 'u8[2048]{0}', space=vmem, size = 0x800, scoped, tag = 'output window, operand 2']
    %11 = vsyncpa [#allocation3], 0
    %s12 = scalar_lea.sflag [#allocation3], 1
    %13 = vsyncpa %s12, 0
    %14 = vsyncpa [#allocation6], 0
    %s15 = scalar_lea.sflag [#allocation6], 1
    %16 = vsyncpa %s15, 0
    %17 = vsyncpa [#allocation4], 0
    %s18 = scalar_lea.sflag [#allocation4], 1
    %19 = vsyncpa %s18, 0
    %20 = vsyncpa [#allocation10], 0
    %s21 = scalar_lea.sflag [#allocation10], 1
    %22 = vsyncpa %s21, 0
    loop: start=0, step=1, limit=4
    $region2: #{tpu_custom_call.1} parent=1 // loop_pre_header
      _
    $region3: #{tpu_custom_call.1} parent=1 // loop_header
      %s24 = sphi 0, %s28
      %p25 = scmp.ge.s32.totalorder %s24, 4
      %s31 = sphi 0, %s43
      %s32 = sphi 0, %s39
      %s33 = sphi 0, %s31
      %s34 = sphi 0, %s32
      %s35 = sphi 0, %s33
      %s36 = sphi 0, %s34
      %s48 = sphi 0, %s50
      %s51 = sphi 0, %s48
      %s52 = sphi 0, %s51
      %s68 = sphi 0, %s52
      %s76 = sphi 0, %s78
      %s79 = sphi 0, %s76
      %s80 = sphi 0, %s79
      %s96 = sphi 0, %s80
      %s104 = sphi 0, %s106
      %s107 = sphi 0, %s104
      %s108 = sphi 0, %s107
      %s124 = sphi 0, %s108
      %s132 = sphi 0, %s134
      %s135 = sphi 0, %s132
      %s136 = sphi 0, %s135
      %s152 = sphi 0, %s136
      %s160 = sphi 0, %s162
      %s163 = sphi 0, %s160
      %s164 = sphi 0, %s163
      %s180 = sphi 0, %s164
      %s188 = sphi 0, %s190
      %s191 = sphi 0, %s188
      %s192 = sphi 0, %s191
      %s208 = sphi 0, %s192
    $region4: #{tpu_custom_call.1} parent=1 // loop_header_branch
      %27 = sbr.rel (%p25) target = $region8
    $region5: #{tpu_custom_call.1} parent=1 // loop_body
      %s29 = ssub.s32 %s24, 1
      %s30 = ssub.s32 %s24, 2
      %s37 = sadd.s32 1, %s32
      %p38 = scmp.ge.s32.totalorder %s37, 1
      %s39 = scalar_select %p38, 0, %s37
      %s40 = sadd.s32 1, %s31
      %s41 = scalar_select %p38, %s40, %s31
      %p42 = scmp.ge.s32.totalorder %s41, 2
      %s43 = scalar_select %p42, 0, %s41
      %s44 = ssub.s32 %s31, %s43
      %s45 = ssub.s32 %s32, %s39
      %s46 = sor.u32 %s44, %s45
      %p47 = scmp.eq.s32.totalorder %s46, 0
      %s49 = sadd.s32 %s48, 1
      %s50 = scalar_select %p47, %s48, %s49
      %p53 = pneg %p47
      %p54 = scmp.eq.s32.totalorder %s24, 1
      %p55 = por %p53, %p54
      %p56 = scmp.ne.s32.totalorder %s48, %s51
      %p57 = scmp.eq.s32.totalorder %s24, 0
      %p58 = por %p56, %p57
      %p59 = scmp.ne.s32.totalorder %s48, %s51
      %p60 = scmp.eq.s32.totalorder %s29, 1
      %p61 = por %p59, %p60
      %p62 = scmp.ne.s32.totalorder %s51, %s52
      %p63 = scmp.eq.s32.totalorder %s29, 0
      %p64 = por %p62, %p63
      %p65 = scmp.ne.s32.totalorder %s51, %s52
      %p66 = scmp.eq.s32.totalorder %s30, 1
      %p67 = por %p65, %p66
      %p69 = scmp.ne.s32.totalorder %s52, %s68
      %p70 = scmp.eq.s32.totalorder %s30, 0
      %p71 = por %p69, %p70
      %s72 = ssub.s32 %s31, %s43
      %s73 = ssub.s32 %s32, %s39
      %s74 = sor.u32 %s72, %s73
      %p75 = scmp.eq.s32.totalorder %s74, 0
      %s77 = sadd.s32 %s76, 1
      %s78 = scalar_select %p75, %s76, %s77
      %p81 = pneg %p75
      %p82 = scmp.eq.s32.totalorder %s24, 1
      %p83 = por %p81, %p82
      %p84 = scmp.ne.s32.totalorder %s76, %s79
      %p85 = scmp.eq.s32.totalorder %s24, 0
      %p86 = por %p84, %p85
      %p87 = scmp.ne.s32.totalorder %s76, %s79
      %p88 = scmp.eq.s32.totalorder %s29, 1
      %p89 = por %p87, %p88
      %p90 = scmp.ne.s32.totalorder %s79, %s80
      %p91 = scmp.eq.s32.totalorder %s29, 0
      %p92 = por %p90, %p91
      %p93 = scmp.ne.s32.totalorder %s79, %s80
      %p94 = scmp.eq.s32.totalorder %s30, 1
      %p95 = por %p93, %p94
      %p97 = scmp.ne.s32.totalorder %s80, %s96
      %p98 = scmp.eq.s32.totalorder %s30, 0
      %p99 = por %p97, %p98
      %s100 = ssub.s32 %s31, %s43
      %s101 = ssub.s32 %s32, %s39
      %s102 = sor.u32 %s100, %s101
      %p103 = scmp.eq.s32.totalorder %s102, 0
      %s105 = sadd.s32 %s104, 1
      %s106 = scalar_select %p103, %s104, %s105
      %p109 = pneg %p103
      %p110 = scmp.eq.s32.totalorder %s24, 1
      %p111 = por %p109, %p110
      %p112 = scmp.ne.s32.totalorder %s104, %s107
      %p113 = scmp.eq.s32.totalorder %s24, 0
      %p114 = por %p112, %p113
      %p115 = scmp.ne.s32.totalorder %s104, %s107
      %p116 = scmp.eq.s32.totalorder %s29, 1
      %p117 = por %p115, %p116
      %p118 = scmp.ne.s32.totalorder %s107, %s108
      %p119 = scmp.eq.s32.totalorder %s29, 0
      %p120 = por %p118, %p119
      %p121 = scmp.ne.s32.totalorder %s107, %s108
      %p122 = scmp.eq.s32.totalorder %s30, 1
      %p123 = por %p121, %p122
      %p125 = scmp.ne.s32.totalorder %s108, %s124
      %p126 = scmp.eq.s32.totalorder %s30, 0
      %p127 = por %p125, %p126
      %s128 = ssub.s32 %s31, %s43
      %s129 = ssub.s32 %s32, %s39
      %s130 = sor.u32 %s128, %s129
      %p131 = scmp.eq.s32.totalorder %s130, 0
      %s133 = sadd.s32 %s132, 1
      %s134 = scalar_select %p131, %s132, %s133
      %p137 = pneg %p131
      %p138 = scmp.eq.s32.totalorder %s24, 1
      %p139 = por %p137, %p138
      %p140 = scmp.ne.s32.totalorder %s132, %s135
      %p141 = scmp.eq.s32.totalorder %s24, 0
      %p142 = por %p140, %p141
      %p143 = scmp.ne.s32.totalorder %s132, %s135
      %p144 = scmp.eq.s32.totalorder %s29, 1
      %p145 = por %p143, %p144
      %p146 = scmp.ne.s32.totalorder %s135, %s136
      %p147 = scmp.eq.s32.totalorder %s29, 0
      %p148 = por %p146, %p147
      %p149 = scmp.ne.s32.totalorder %s135, %s136
      %p150 = scmp.eq.s32.totalorder %s30, 1
      %p151 = por %p149, %p150
      %p153 = scmp.ne.s32.totalorder %s136, %s152
      %p154 = scmp.eq.s32.totalorder %s30, 0
      %p155 = por %p153, %p154
      %s156 = ssub.s32 %s31, %s43
      %s157 = ssub.s32 %s32, %s39
      %s158 = sor.u32 %s156, %s157
      %p159 = scmp.eq.s32.totalorder %s158, 0
      %s161 = sadd.s32 %s160, 1
      %s162 = scalar_select %p159, %s160, %s161
      %p165 = pneg %p159
      %p166 = scmp.eq.s32.totalorder %s24, 1
      %p167 = por %p165, %p166
      %p168 = scmp.ne.s32.totalorder %s160, %s163
      %p169 = scmp.eq.s32.totalorder %s24, 0
      %p170 = por %p168, %p169
      %p171 = scmp.ne.s32.totalorder %s160, %s163
      %p172 = scmp.eq.s32.totalorder %s29, 1
      %p173 = por %p171, %p172
      %p174 = scmp.ne.s32.totalorder %s163, %s164
      %p175 = scmp.eq.s32.totalorder %s29, 0
      %p176 = por %p174, %p175
      %p177 = scmp.ne.s32.totalorder %s163, %s164
      %p178 = scmp.eq.s32.totalorder %s30, 1
      %p179 = por %p177, %p178
      %p181 = scmp.ne.s32.totalorder %s164, %s180
      %p182 = scmp.eq.s32.totalorder %s30, 0
      %p183 = por %p181, %p182
      %s184 = ssub.s32 %s31, %s43
      %s185 = ssub.s32 %s32, %s39
      %s186 = sor.u32 %s184, %s185
      %p187 = scmp.eq.s32.totalorder %s186, 0
      %s189 = sadd.s32 %s188, 1
      %s190 = scalar_select %p187, %s188, %s189
      %p193 = pneg %p187
      %p194 = scmp.eq.s32.totalorder %s24, 1
      %p195 = por %p193, %p194
      %p196 = scmp.ne.s32.totalorder %s188, %s191
      %p197 = scmp.eq.s32.totalorder %s24, 0
      %p198 = por %p196, %p197
      %p199 = scmp.ne.s32.totalorder %s188, %s191
      %p200 = scmp.eq.s32.totalorder %s29, 1
      %p201 = por %p199, %p200
      %p202 = scmp.ne.s32.totalorder %s191, %s192
      %p203 = scmp.eq.s32.totalorder %s29, 0
      %p204 = por %p202, %p203
      %p205 = scmp.ne.s32.totalorder %s191, %s192
      %p206 = scmp.eq.s32.totalorder %s30, 1
      %p207 = por %p205, %p206
      %p209 = scmp.ne.s32.totalorder %s192, %s208
      %p210 = scmp.eq.s32.totalorder %s30, 0
      %p211 = por %p209, %p210
      %p212 = scmp.le.s32.totalorder 1, %s24
      %p213 = scmp.lt.s32.totalorder %s24, 3
      %p214 = pnand %p212, %p213
      %p215 = pneg %p214
      // Predicated region
      $region9: #{tpu_custom_call.1} parent=5 // pred_check
        _
      $region10: #{tpu_custom_call.1} parent=5 // pred_check_branch
        %217 = sbr.rel (%p214) target = $region12
      $region11: #{tpu_custom_call.1} parent=5 // pred_region
        %s218 = ssub.s32 %s24, 1
      $region12: #{tpu_custom_call.1} parent=5 // pred_fallthru
        _
      %p219 = scmp.lt.s32.totalorder %s24, 2
      // Predicated region
      $region13: #{tpu_custom_call.1} parent=5 // pred_check
        %p220 = pneg %p219
      $region14: #{tpu_custom_call.1} parent=5 // pred_check_branch
        %222 = sbr.rel (%p220) target = $region16
      $region15: #{tpu_custom_call.1} parent=5 // pred_region
        // Predicated region
        $region17: #{tpu_custom_call.1} parent=15 // pred_check
          %p223 = pneg %p58
        $region18: #{tpu_custom_call.1} parent=15 // pred_check_branch
          %225 = sbr.rel (%p223) target = $region20
        $region19: #{tpu_custom_call.1} parent=15 // pred_region
          %s226 = sand.u32 %s48, 1
          %s227 = scalar_lea.sflag [#allocation3], %s226
          %s228 = sand.u32 %s48, 1
          %s229 = smul.addr %s228, 8
          %s230 = scalar_lea.vmem [#allocation2], %s229
          %s232 = ssub.s32 128, 128
          %233 = vsyncadd %s227, %s232
          %s234 = smul.addr %s31, 4
          %s235 = sadd.s32 %s32, %s234
          %s236 = smul.addr %s235, 32
          %s237 = scalar_lea.hbm %s0, %s236
          %s238 = sshll.u32 %s230, 4
          %s239 = int_to_ptr.vmem [resolvable:$true] %s238
          %244 = dma.hbm_to_vmem [thread:$0]  %s237, 128, %s239, %s227, 32, 32, 2
        $region20: #{tpu_custom_call.1} parent=15 // pred_fallthru
          _
        // Predicated region
        $region21: #{tpu_custom_call.1} parent=15 // pred_check
          %p245 = pneg %p86
        $region22: #{tpu_custom_call.1} parent=15 // pred_check_branch
          %247 = sbr.rel (%p245) target = $region24
        $region23: #{tpu_custom_call.1} parent=15 // pred_region
          %s248 = sand.u32 %s24, 1
          %s249 = scalar_lea.sflag [#allocation6], %s248
          %s250 = sand.u32 %s76, 1
          %s251 = smul.addr %s250, 2
          %s252 = scalar_lea.vmem [#allocation5], %s251
          %s254 = ssub.s32 32, 32
          %255 = vsyncadd %s249, %s254
          %s256 = sadd.s32 %s32, %s31
          %s257 = smul.addr %s256, 32
          %s258 = scalar_lea.hbm %s1, %s257
          %s260 = sshll.u32 %s252, 4
          %s261 = int_to_ptr.vmem [resolvable:$true] %s260
          %263 = dma.hbm_to_vmem [thread:$0]  %s258, 32, %s261, %s249
        $region24: #{tpu_custom_call.1} parent=15 // pred_fallthru
          _
        // Predicated region
        $region25: #{tpu_custom_call.1} parent=15 // pred_check
          %p264 = pneg %p114
        $region26: #{tpu_custom_call.1} parent=15 // pred_check_branch
          %266 = sbr.rel (%p264) target = $region28
        $region27: #{tpu_custom_call.1} parent=15 // pred_region
          %s267 = sand.u32 %s24, 1
          %s268 = scalar_lea.sflag [#allocation6], %s267
          %s269 = sand.u32 %s104, 1
          %s270 = smul.addr %s269, 16
          %s271 = scalar_lea.vmem [#allocation7], %s270
          %s273 = ssub.s32 256, 256
          %274 = vsyncadd %s268, %s273
          %s275 = smul.addr %s31, 8
          %s276 = sadd.s32 %s32, %s275
          %s277 = smul.addr %s276, 32
          %s278 = scalar_lea.hbm %s2, %s277
          %s279 = sshll.u32 %s271, 4
          %s280 = int_to_ptr.vmem [resolvable:$true] %s279
          %285 = dma.hbm_to_vmem [thread:$0]  %s278, 256, %s280, %s268, 32, 32, 2
        $region28: #{tpu_custom_call.1} parent=15 // pred_fallthru
          _
      $region16: #{tpu_custom_call.1} parent=5 // pred_fallthru
        _
      %p286 = scmp.le.s32.totalorder 1, %s24
      %p287 = scmp.lt.s32.totalorder %s24, 3
      %p288 = pnand %p286, %p287
      %p289 = pneg %p288
      // Predicated region
      $region29: #{tpu_custom_call.1} parent=5 // pred_check
        _
      $region30: #{tpu_custom_call.1} parent=5 // pred_check_branch
        %291 = sbr.rel (%p288) target = $region32
      $region31: #{tpu_custom_call.1} parent=5 // pred_region
        %s292 = ssub.s32 %s24, 1
        %s293 = sand.u32 %s51, 1
        %s294 = scalar_lea.sflag [#allocation3], %s293
        %s295 = sand.u32 %s51, 1
        %s296 = smul.addr %s295, 8
        %s297 = scalar_lea.vmem [#allocation2], %s296
        // Predicated region
        $region33: #{tpu_custom_call.1} parent=31 // pred_check
          %p298 = pneg %p64
        $region34: #{tpu_custom_call.1} parent=31 // pred_check_branch
          %300 = sbr.rel (%p298) target = $region36
        $region35: #{tpu_custom_call.1} parent=31 // pred_region
          %301 = dma.done %s294, 128
        $region36: #{tpu_custom_call.1} parent=31 // pred_fallthru
          _
        %s302 = sand.u32 %s29, 1
        %s303 = scalar_lea.sflag [#allocation6], %s302
        %s304 = sand.u32 %s79, 1
        %s305 = smul.addr %s304, 2
        %s306 = scalar_lea.vmem [#allocation5], %s305
        // Predicated region
        $region37: #{tpu_custom_call.1} parent=31 // pred_check
          %p307 = pneg %p92
        $region38: #{tpu_custom_call.1} parent=31 // pred_check_branch
          %309 = sbr.rel (%p307) target = $region40
        $region39: #{tpu_custom_call.1} parent=31 // pred_region
          %310 = dma.done %s303, 32
        $region40: #{tpu_custom_call.1} parent=31 // pred_fallthru
          _
        %s311 = sand.u32 %s29, 1
        %s312 = scalar_lea.sflag [#allocation6], %s311
        %s313 = sand.u32 %s107, 1
        %s314 = smul.addr %s313, 16
        %s315 = scalar_lea.vmem [#allocation7], %s314
        // Predicated region
        $region41: #{tpu_custom_call.1} parent=31 // pred_check
          %p316 = pneg %p120
        $region42: #{tpu_custom_call.1} parent=31 // pred_check_branch
          %318 = sbr.rel (%p316) target = $region44
        $region43: #{tpu_custom_call.1} parent=31 // pred_region
          %319 = dma.done %s312, 256
        $region44: #{tpu_custom_call.1} parent=31 // pred_fallthru
          _
        %s320 = sand.u32 %s51, 1
        %s321 = scalar_lea.sflag [#allocation3], %s320
        %s322 = sand.u32 %s51, 1
        %s323 = smul.addr %s322, 8
        %s324 = scalar_lea.vmem [#allocation2], %s323
        %p325 = pneg %p64
        %p326 = pneg %p61
        %s327 = sand.u32 %s29, 1
        %s328 = scalar_lea.sflag [#allocation6], %s327
        %s329 = sand.u32 %s79, 1
        %s330 = smul.addr %s329, 2
        %s331 = scalar_lea.vmem [#allocation5], %s330
        %p332 = pneg %p92
        %p333 = pneg %p89
        %s334 = sand.u32 %s29, 1
        %s335 = scalar_lea.sflag [#allocation6], %s334
        %s336 = sand.u32 %s107, 1
        %s337 = smul.addr %s336, 16
        %s338 = scalar_lea.vmem [#allocation7], %s337
        %p339 = pneg %p120
        %p340 = pneg %p117
        %p341 = pneg %p148
        %p342 = pneg %p145
        %s343 = sand.u32 %s135, 1
        %s344 = scalar_lea.sflag [#allocation4], %s343
        %s345 = sand.u32 %s135, 1
        %s346 = smul.addr %s345, 8
        %s347 = scalar_lea.vmem [#allocation8], %s346
        %p348 = pneg %p176
        %p349 = pneg %p173
        %s350 = sand.u32 %s29, 1
        %s351 = scalar_lea.sflag [#allocation10], %s350
        %s352 = sand.u32 %s163, 1
        %s353 = smul.addr %s352, 2
        %s354 = scalar_lea.vmem [#allocation9], %s353
        %p355 = pneg %p204
        %p356 = pneg %p201
        %s357 = sand.u32 %s29, 1
        %s358 = scalar_lea.sflag [#allocation10], %s357
        %s359 = sand.u32 %s191, 1
        %s360 = smul.addr %s359, 2
        %s361 = scalar_lea.vmem [#allocation11], %s360
        %v362 = vlaneseq
        %v363 = vshrl.u32 %v362, 7
        %v364 = vcvt.s32.f32 %v363
        %v365 = vlaneseq
        %v366 = vand.u32 %v365, 127
        %v367 = vcvt.s32.f32 %v366
        %s368 = smul.u32 %s34, 2
        %s369 = scvt.s32.f32 %s368
        %v370 = vstv %s369
        %v371 = vadd.f32 %v370, %v364
        %v372 = vmul.f32 %v371, 128.0
        %v373 = vadd.f32 %v372, %v367
        %v374 = vadd.f32 %v373, 0.5
        %v375 = vmul.f32 %v374, 0.0625
        %v376 = vfloor.f32 %v375
        %v377 = vmul.f32 %v376, 16.0
        %v378 = vsub.f32 %v373, %v377
        %vm379 = vcmp.lt.f32.partialorder %v378, 0.0
        %v380 = vsub.f32 %v376, 1.0
        %v381 = vsel %vm379, %v380, %v376
        %v382 = vadd.f32 %v378, 16.0
        %v383 = vsel %vm379, %v382, %v378
        %vm384 = vcmp.ge.f32.partialorder %v383, 16.0
        %v385 = vadd.f32 %v381, 1.0
        %v386 = vsel %vm384, %v385, %v381
        %v387 = vsub.f32 %v383, 16.0
        %v388 = vsel %vm384, %v387, %v383
        %v389 = vmul.f32 %v388, 8.0
        %v390 = vadd.f32 %v389, 4.0
        %v391 = vmul.f32 %v386, 8.0
        %v392 = vadd.f32 %v391, 4.0
        %v393 = vld [vmem:[%s297] sm:$0x3]
        %v394 = vmul.f32 %v393, 1.442695
        %v395 = vpow.pop %v394
        %v396 = vmul.f32 %v395, 8.0
        %s397 = scalar_lea.vmem %s297, 2 [#allocation2]
        %v398 = vld [vmem:[%s397] sm:$0x3]
        %v399 = vmul.f32 %v398, 1.442695
        %v400 = vpow.pop %v399
        %v401 = vmul.f32 %v400, 8.0
        %s402 = scalar_lea.vmem %s297, 4 [#allocation2]
        %v403 = vld [vmem:[%s402] sm:$0x3]
        %v404 = vmul.f32 %v403, 1.442695
        %v405 = vpow.pop %v404
        %v406 = vmul.f32 %v405, 8.0
        %s407 = scalar_lea.vmem %s297, 6 [#allocation2]
        %v408 = vld [vmem:[%s407] sm:$0x3]
        %v409 = vmul.f32 %v408, 1.442695
        %v410 = vpow.pop %v409
        %v411 = vmul.f32 %v410, 8.0
        %v412 = vsub.f32 %v390, %v396
        %v413 = vmax.f32 %v412, 0.0
        %v414 = vmin.f32 %v413, 128.0
        %v415 = vsub.f32 %v392, %v401
        %v416 = vmax.f32 %v415, 0.0
        %v417 = vmin.f32 %v416, 128.0
        %v418 = vadd.f32 %v390, %v406
        %v419 = vmax.f32 %v418, 0.0
        %v420 = vmin.f32 %v419, 128.0
        %v421 = vadd.f32 %v392, %v411
        %v422 = vmax.f32 %v421, 0.0
        %v423 = vmin.f32 %v422, 128.0
        %v424 = vadd.f32 %v414, %v420
        %v425 = vmul.f32 %v424, 0.5
        %426 = vst [vmem:[%s347] sm:$0x3] %v425
        %v427 = vadd.f32 %v417, %v423
        %v428 = vmul.f32 %v427, 0.5
        %s429 = scalar_lea.vmem %s347, 2 [#allocation8]
        %430 = vst [vmem:[%s429] sm:$0x3] %v428
        %v431 = vsub.f32 %v420, %v414
        %s432 = scalar_lea.vmem %s347, 4 [#allocation8]
        %433 = vst [vmem:[%s432] sm:$0x3] %v431
        %v434 = vsub.f32 %v423, %v417
        %s435 = scalar_lea.vmem %s347, 6 [#allocation8]
        %436 = vst [vmem:[%s435] sm:$0x3] %v434
        %v437 = vld [vmem:[%s315] sm:$0x3]
        %s438 = scalar_lea.vmem %s315, 2 [#allocation7]
        %v439 = vld [vmem:[%s438] sm:$0x3]
        %vm440 = vcmp.gt.f32.partialorder %v439, %v437
        %v441 = vsel %vm440, %v439, %v437
        %v442 = vsel %vm440, 1, 0
        %s443 = scalar_lea.vmem %s315, 4 [#allocation7]
        %v444 = vld [vmem:[%s443] sm:$0x3]
        %vm445 = vcmp.gt.f32.partialorder %v444, %v441
        %v446 = vsel %vm445, %v444, %v441
        %v447 = vsel %vm445, 2, %v442
        %s448 = scalar_lea.vmem %s315, 6 [#allocation7]
        %v449 = vld [vmem:[%s448] sm:$0x3]
        %vm450 = vcmp.gt.f32.partialorder %v449, %v446
        %v451 = vsel %vm450, %v449, %v446
        %v452 = vsel %vm450, 3, %v447
        %s453 = scalar_lea.vmem %s315, 8 [#allocation7]
        %v454 = vld [vmem:[%s453] sm:$0x3]
        %vm455 = vcmp.gt.f32.partialorder %v454, %v451
        %v456 = vsel %vm455, %v454, %v451
        %v457 = vsel %vm455, 4, %v452
        %s458 = scalar_lea.vmem %s315, 10 [#allocation7]
        %v459 = vld [vmem:[%s458] sm:$0x3]
        %vm460 = vcmp.gt.f32.partialorder %v459, %v456
        %v461 = vsel %vm460, %v459, %v456
        %v462 = vsel %vm460, 5, %v457
        %s463 = scalar_lea.vmem %s315, 12 [#allocation7]
        %v464 = vld [vmem:[%s463] sm:$0x3]
        %vm465 = vcmp.gt.f32.partialorder %v464, %v461
        %v466 = vsel %vm465, %v464, %v461
        %v467 = vsel %vm465, 6, %v462
        %s468 = scalar_lea.vmem %s315, 14 [#allocation7]
        %v469 = vld [vmem:[%s468] sm:$0x3]
        %vm470 = vcmp.gt.f32.partialorder %v469, %v466
        %v471 = vsel %vm470, %v469, %v466
        %v472 = vsel %vm470, 7, %v467
        %v473 = vld [vmem:[%s306] sm:$0x3]
        %v474 = vxor.u32 %v473, 2147483648
        %v475 = vmul.f32 %v474, 1.442695
        %v476 = vpow.pop %v475
        %v477 = vadd.f32 %v476, 1.0
        %v478 = vrcp.pop %v477
        %v479 = vmul.f32 1.0, %v478
        %v480 = vxor.u32 %v471, 2147483648
        %v481 = vmul.f32 %v480, 1.442695
        %v482 = vpow.pop %v481
        %v483 = vadd.f32 %v482, 1.0
        %v484 = vrcp.pop %v483
        %v485 = vmul.f32 1.0, %v484
        %486 = vst [vmem:[%s354] sm:$0x3] %v472
        %v487 = vmul.f32 %v479, %v485
        %v488 = vrsqrt.pop %v487
        %v489 = vmul.f32 %v487, %v488
        %vm490 = vcmp.eq.f32.partialorder %v487, inf
        %v491 = vsel %vm490, %v487, %v489
        %vm492 = vcmp.eq.f32.partialorder %v487, 0.0
        %v493 = vand.u32 %v487, 2147483648
        %v494 = vsel %vm492, %v493, %v491
        %495 = vst [vmem:[%s361] sm:$0x3] %v494
        %s496 = sand.u32 %s135, 1
        %s497 = scalar_lea.sflag [#allocation4], %s496
        %s498 = sand.u32 %s135, 1
        %s499 = smul.addr %s498, 8
        %s500 = scalar_lea.vmem [#allocation8], %s499
        %s501 = sand.u32 %s29, 1
        %s502 = scalar_lea.sflag [#allocation10], %s501
        %s503 = sand.u32 %s163, 1
        %s504 = smul.addr %s503, 2
        %s505 = scalar_lea.vmem [#allocation9], %s504
        %s506 = sand.u32 %s29, 1
        %s507 = scalar_lea.sflag [#allocation10], %s506
        %s508 = sand.u32 %s191, 1
        %s509 = smul.addr %s508, 2
        %s510 = scalar_lea.vmem [#allocation11], %s509
        // Predicated region
        $region45: #{tpu_custom_call.1} parent=31 // pred_check
          %p511 = pneg %p145
        $region46: #{tpu_custom_call.1} parent=31 // pred_check_branch
          %513 = sbr.rel (%p511) target = $region48
        $region47: #{tpu_custom_call.1} parent=31 // pred_region
          %s515 = ssub.s32 128, 128
          %516 = vsyncadd %s497, %s515
          %s517 = smul.addr %s33, 4
          %s518 = sadd.s32 %s34, %s517
          %s519 = smul.addr %s518, 32
          %s520 = scalar_lea.hbm %s3, %s519
          %s521 = sshll.u32 %s500, 4
          %s522 = int_to_ptr.vmem [resolvable:$true] %s521
          %527 = dma.vmem_to_hbm [thread:$0]  %s522, 128, %s520, %s497, 32, 32, 2
        $region48: #{tpu_custom_call.1} parent=31 // pred_fallthru
          _
        // Predicated region
        $region49: #{tpu_custom_call.1} parent=31 // pred_check
          %p528 = pneg %p173
        $region50: #{tpu_custom_call.1} parent=31 // pred_check_branch
          %530 = sbr.rel (%p528) target = $region52
        $region51: #{tpu_custom_call.1} parent=31 // pred_region
          %s532 = ssub.s32 32, 32
          %533 = vsyncadd %s502, %s532
          %s534 = sadd.s32 %s34, %s33
          %s535 = smul.addr %s534, 32
          %s536 = scalar_lea.hbm %s4, %s535
          %s538 = sshll.u32 %s505, 4
          %s539 = int_to_ptr.vmem [resolvable:$true] %s538
          %541 = dma.vmem_to_hbm [thread:$0]  %s539, 32, %s536, %s502
        $region52: #{tpu_custom_call.1} parent=31 // pred_fallthru
          _
        // Predicated region
        $region53: #{tpu_custom_call.1} parent=31 // pred_check
          %p542 = pneg %p201
        $region54: #{tpu_custom_call.1} parent=31 // pred_check_branch
          %544 = sbr.rel (%p542) target = $region56
        $region55: #{tpu_custom_call.1} parent=31 // pred_region
          %s546 = ssub.s32 32, 32
          %547 = vsyncadd %s507, %s546
          %s548 = sadd.s32 %s34, %s33
          %s549 = smul.addr %s548, 32
          %s550 = scalar_lea.hbm %s5, %s549
          %s552 = sshll.u32 %s510, 4
          %s553 = int_to_ptr.vmem [resolvable:$true] %s552
          %555 = dma.vmem_to_hbm [thread:$0]  %s553, 32, %s550, %s507
        $region56: #{tpu_custom_call.1} parent=31 // pred_fallthru
          _
      $region32: #{tpu_custom_call.1} parent=5 // pred_fallthru
        _
      %p556 = scmp.le.s32.totalorder 2, %s24
      // Predicated region
      $region57: #{tpu_custom_call.1} parent=5 // pred_check
        %p557 = pneg %p556
      $region58: #{tpu_custom_call.1} parent=5 // pred_check_branch
        %559 = sbr.rel (%p557) target = $region60
      $region59: #{tpu_custom_call.1} parent=5 // pred_region
        %s560 = ssub.s32 %s24, 2
        // Predicated region
        $region61: #{tpu_custom_call.1} parent=59 // pred_check
          %p561 = pneg %p151
        $region62: #{tpu_custom_call.1} parent=59 // pred_check_branch
          %563 = sbr.rel (%p561) target = $region64
        $region63: #{tpu_custom_call.1} parent=59 // pred_region
          %s564 = sand.u32 %s136, 1
          %s565 = scalar_lea.sflag [#allocation4], %s564
          %s566 = sand.u32 %s136, 1
          %s567 = smul.addr %s566, 8
          %s568 = scalar_lea.vmem [#allocation8], %s567
          %569 = dma.done %s565, 128
        $region64: #{tpu_custom_call.1} parent=59 // pred_fallthru
          _
        // Predicated region
        $region65: #{tpu_custom_call.1} parent=59 // pred_check
          %p570 = pneg %p179
        $region66: #{tpu_custom_call.1} parent=59 // pred_check_branch
          %572 = sbr.rel (%p570) target = $region68
        $region67: #{tpu_custom_call.1} parent=59 // pred_region
          %s573 = sand.u32 %s30, 1
          %s574 = scalar_lea.sflag [#allocation10], %s573
          %s575 = sand.u32 %s164, 1
          %s576 = smul.addr %s575, 2
          %s577 = scalar_lea.vmem [#allocation9], %s576
          %578 = dma.done %s574, 32
        $region68: #{tpu_custom_call.1} parent=59 // pred_fallthru
          _
        // Predicated region
        $region69: #{tpu_custom_call.1} parent=59 // pred_check
          %p579 = pneg %p207
        $region70: #{tpu_custom_call.1} parent=59 // pred_check_branch
          %581 = sbr.rel (%p579) target = $region72
        $region71: #{tpu_custom_call.1} parent=59 // pred_region
          %s582 = sand.u32 %s30, 1
          %s583 = scalar_lea.sflag [#allocation10], %s582
          %s584 = sand.u32 %s192, 1
          %s585 = smul.addr %s584, 2
          %s586 = scalar_lea.vmem [#allocation11], %s585
          %587 = dma.done %s583, 32
        $region72: #{tpu_custom_call.1} parent=59 // pred_fallthru
          _
      $region60: #{tpu_custom_call.1} parent=5 // pred_fallthru
        _
    $region6: #{tpu_custom_call.1} parent=1 // loop_footer
      %s28 = sadd.s32 1, %s24
    $region7: #{tpu_custom_call.1} parent=1 // loop_footer_branch
      %23 = sbr.rel target = $region3
    $region8: #{tpu_custom_call.1} parent=1 // loop_exit
      _
    %588 = vsyncpa [#allocation3], 1
    %s589 = scalar_lea.sflag [#allocation3], 1
    %590 = vsyncpa %s589, 1
    %591 = vsyncpa [#allocation6], 1
    %s592 = scalar_lea.sflag [#allocation6], 1
    %593 = vsyncpa %s592, 1
    %594 = vsyncpa [#allocation4], 1
    %s595 = scalar_lea.sflag [#allocation4], 1
    %596 = vsyncpa %s595, 1
    %597 = vsyncpa [#allocation10], 1
    %s598 = scalar_lea.sflag [#allocation10], 1
    %599 = vsyncpa %s598, 1

</llo_original>
